<compile_context>
chip_gen: v5e
topology: v5e:2x2
jax: 0.10.0
libtpu: 0.0.40
codegen_flags: <defaults>
</compile_context>

<pallas_src>
import math
from functools import partial

import jax
import jax.numpy as jnp
from jax.experimental import pallas as pl
from jax.experimental.pallas import tpu as pltpu


def _round_up(x, m):
    return ((x + m - 1) // m) * m


# --------------------------------------------------------------------------
# Kernel 1: (M, K) @ (K, N) + bias, optional exact-erf GELU
# --------------------------------------------------------------------------
def _matmul_bias_act_kernel(x_ref, w_ref, b_ref, o_ref, *, activation):
    # x_ref: (TM, K), w_ref: (K, TN), b_ref: (1, TN), o_ref: (TM, TN)
    y = jnp.dot(x_ref[...], w_ref[...], preferred_element_type=jnp.float32)
    y = y + b_ref[...].astype(jnp.float32)
    if activation == "gelu":
        # Exact (erf) GELU, matching torch.nn.functional.gelu default.
        y = jax.nn.gelu(y, approximate=False)
    o_ref[...] = y.astype(o_ref.dtype)


def _weight_block_spec(K, tile_n, grid_n):
    idx = lambda j, i: (0, j)
    # Perf feedback: when the weight tile is grid-invariant (single N tile),
    # the default double-buffering wastes VMEM on a block that never changes.
    if grid_n == 1 and hasattr(pl, "Buffered"):
        try:
            return pl.BlockSpec((K, tile_n), idx, pipeline_mode=pl.Buffered(1))
        except TypeError:  # older BlockSpec without pipeline_mode
            pass
    return pl.BlockSpec((K, tile_n), idx)


def matmul_bias_act(x2d, weight, bias, *, activation=None, tile_m=None, tile_n=None):
    """x2d: (M, K), weight: (K, N), bias: (N,) -> (M, N). f32 accumulation on MXU."""
    M, K = x2d.shape
    Kw, N = weight.shape
    assert K == Kw and bias.shape == (N,)
    out_dtype = x2d.dtype

    # MXU/lane-friendly tiles; ragged edges are zero-padded (no hard asserts).
    # NOTE: on v7x one would additionally cast x/weight to bf16 for full-rate MXU;
    # kept in f32 here to match the f32 PyTorch reference bit-for-bit-ish.
    if tile_m is None:
        tile_m = min(256, _round_up(M, 8))
    if tile_n is None:
        tile_n = min(512, _round_up(N, 128))
    Mp = _round_up(M, tile_m)
    Np = _round_up(N, tile_n)

    xp = x2d if Mp == M else jnp.pad(x2d, ((0, Mp - M), (0, 0)))
    wp = weight if Np == N else jnp.pad(weight, ((0, 0), (0, Np - N)))
    bp = (bias if Np == N else jnp.pad(bias, (0, Np - N))).reshape(1, Np)

    grid_n = Np // tile_n
    grid_m = Mp // tile_m
    grid = (grid_n, grid_m)  # N OUTER, M inner: each weight tile DMA'd once.

    itemsize = jnp.dtype(out_dtype).itemsize
    vmem_est = (2 * tile_m * K * itemsize        # x tile (double-buffered)
                + 2 * K * tile_n * itemsize      # weight tile
                + 2 * tile_n * itemsize          # bias tile
                + 2 * tile_m * tile_n * itemsize # output tile
                + 2 * tile_m * tile_n * 4)       # f32 compute temporaries
    vmem_limit = int(max(32 * 2**20, min(vmem_est + (8 << 20), 64 * 2**20)))

    cost = pl.CostEstimate(
        flops=2 * Mp * K * Np,
        transcendentals=(Mp * Np) if activation == "gelu" else 0,
        bytes_accessed=(grid_n * Mp * K + K * Np + Np + Mp * Np) * itemsize,
    )

    out = pl.pallas_call(
        partial(_matmul_bias_act_kernel, activation=activation),
        out_shape=jax.ShapeDtypeStruct((Mp, Np), out_dtype),
        grid_spec=pltpu.PrefetchScalarGridSpec(
            num_scalar_prefetch=0,
            grid=grid,
            in_specs=[
                pl.BlockSpec((tile_m, K), lambda j, i: (i, 0)),   # x row tile
                _weight_block_spec(K, tile_n, grid_n),            # weight col tile
                pl.BlockSpec((1, tile_n), lambda j, i: (0, j)),   # bias col tile
            ],
            out_specs=pl.BlockSpec((tile_m, tile_n), lambda j, i: (i, j)),
        ),
        compiler_params=pltpu.CompilerParams(
            dimension_semantics=("parallel", "parallel"),
            vmem_limit_bytes=vmem_limit,
        ),
        cost_estimate=cost,
    )(xp, wp, bp)

    if Mp != M or Np != N:
        out = out[:M, :N]
    return out


# --------------------------------------------------------------------------
# Kernel 2: per-(batch, head) softmax attention
# --------------------------------------------------------------------------
def _attention_kernel(q_ref, k_ref, v_ref, m_ref, o_ref, *, scale):
    # q/k/v: (S, D), m: (S, S), o: (S, D)
    q = q_ref[...].astype(jnp.float32)
    k = k_ref[...].astype(jnp.float32)
    v = v_ref[...].astype(jnp.float32)
    scores = jax.lax.dot_general(
        q, k, (((1,), (1,)), ((), ())), preferred_element_type=jnp.float32
    ) * scale
    scores = scores + m_ref[...].astype(jnp.float32)
    probs = jax.nn.softmax(scores, axis=-1)
    o_ref[...] = jnp.dot(probs, v, preferred_element_type=jnp.float32).astype(o_ref.dtype)


def multi_head_attention(q, k, v, mask, *, scale):
    """q/k/v: (B, NH, S, D); mask: (B, S, S) additive. Returns (B, NH, S, D)."""
    B, NH, S, D = q.shape
    qkv_spec = pl.BlockSpec((None, None, S, D), lambda b, h: (b, h, 0, 0))
    return pl.pallas_call(
        partial(_attention_kernel, scale=scale),
        out_shape=jax.ShapeDtypeStruct((B, NH, S, D), q.dtype),
        grid_spec=pltpu.PrefetchScalarGridSpec(
            num_scalar_prefetch=0,
            grid=(B, NH),
            in_specs=[
                qkv_spec, qkv_spec, qkv_spec,
                pl.BlockSpec((None, S, S), lambda b, h: (b, 0, 0)),
            ],
            out_specs=pl.BlockSpec((None, None, S, D), lambda b, h: (b, h, 0, 0)),
        ),
        compiler_params=pltpu.CompilerParams(
            dimension_semantics=("parallel", "parallel"),
        ),
    )(q, k, v, mask)


# --------------------------------------------------------------------------
# Kernel 3: fused residual add + LayerNorm over last dim
# --------------------------------------------------------------------------
def _add_layernorm_kernel(x_ref, r_ref, g_ref, b_ref, o_ref, *, eps):
    h = x_ref[...].astype(jnp.float32) + r_ref[...].astype(jnp.float32)
    mu = jnp.mean(h, axis=-1, keepdims=True)
    var = jnp.mean(jnp.square(h - mu), axis=-1, keepdims=True)
    y = (h - mu) * jax.lax.rsqrt(var + eps)
    y = y * g_ref[...].astype(jnp.float32) + b_ref[...].astype(jnp.float32)
    o_ref[...] = y.astype(o_ref.dtype)


def add_layernorm(x2d, res2d, gamma, beta, *, eps, tile_m=None):
    M, H = x2d.shape
    if tile_m is None:
        tile_m = min(256, _round_up(M, 8))
    Mp = _round_up(M, tile_m)
    xp = x2d if Mp == M else jnp.pad(x2d, ((0, Mp - M), (0, 0)))
    rp = res2d if Mp == M else jnp.pad(res2d, ((0, Mp - M), (0, 0)))
    g2 = gamma.reshape(1, H)
    b2 = beta.reshape(1, H)

    out = pl.pallas_call(
        partial(_add_layernorm_kernel, eps=eps),
        out_shape=jax.ShapeDtypeStruct((Mp, H), x2d.dtype),
        grid_spec=pltpu.PrefetchScalarGridSpec(
            num_scalar_prefetch=0,
            grid=(Mp // tile_m,),
            in_specs=[
                pl.BlockSpec((tile_m, H), lambda i: (i, 0)),
                pl.BlockSpec((tile_m, H), lambda i: (i, 0)),
                pl.BlockSpec((1, H), lambda i: (0, 0)),
                pl.BlockSpec((1, H), lambda i: (0, 0)),
            ],
            out_specs=pl.BlockSpec((tile_m, H), lambda i: (i, 0)),
        ),
        compiler_params=pltpu.CompilerParams(
            dimension_semantics=("parallel",),
        ),
    )(xp, rp, g2, b2)
    return out[:M] if Mp != M else out


# --------------------------------------------------------------------------
# Full Layer forward (eval mode: dropouts are identity)
# --------------------------------------------------------------------------
def layer_forward(hidden_states, attention_mask, params, *, num_heads, eps):
    B, S, H = hidden_states.shape
    D = H // num_heads
    x2d = hidden_states.reshape(B * S, H)

    # SelfAttention: Q/K/V projections (all H -> H)
    q2d = matmul_bias_act(x2d, params["wq"], params["bq"])
    k2d = matmul_bias_act(x2d, params["wk"], params["bk"])
    v2d = matmul_bias_act(x2d, params["wv"], params["bv"])

    def split_heads(t):
        return t.reshape(B, S, num_heads, D).transpose(0, 2, 1, 3)

    ctx = multi_head_attention(
        split_heads(q2d), split_heads(k2d), split_heads(v2d),
        attention_mask, scale=1.0 / math.sqrt(D))
    ctx2d = ctx.transpose(0, 2, 1, 3).reshape(B * S, H)

    # SelfOutput: dense + residual LayerNorm
    attn_dense = matmul_bias_act(ctx2d, params["wo"], params["bo"])
    attn_out = add_layernorm(attn_dense, x2d, params["ln1_g"], params["ln1_b"], eps=eps)

    # Intermediate: dense (H -> I) + exact GELU
    inter = matmul_bias_act(attn_out, params["wi"], params["bi"], activation="gelu")

    # Output: dense (I -> H) + residual LayerNorm
    out_dense = matmul_bias_act(inter, params["wo2"], params["bo2"])
    layer_out = add_layernorm(out_dense, attn_out, params["ln2_g"], params["ln2_b"], eps=eps)

    return layer_out.reshape(B, S, H)


# --------------------------------------------------------------------------
# Pure-JAX reference (mirrors the PyTorch Layer.forward in eval mode)
# --------------------------------------------------------------------------
def reference_forward(hidden_states, attention_mask, params, *, num_heads, eps):
    B, S, H = hidden_states.shape
    D = H // num_heads
    hp = jax.lax.Precision.HIGHEST

    def linear(x, w, b):
        return jnp.dot(x, w, precision=hp) + b

    def split_heads(t):
        return t.reshape(B, S, num_heads, D).transpose(0, 2, 1, 3)

    q = split_heads(linear(hidden_states, params["wq"], params["bq"]))
    k = split_heads(linear(hidden_states, params["wk"], params["bk"]))
    v = split_heads(linear(hidden_states, params["wv"], params["bv"]))

    scores = jnp.einsum("bhqd,bhkd->bhqk", q, k, precision=hp) / math.sqrt(D)
    scores = scores + attention_mask[:, None, :, :]
    probs = jax.nn.softmax(scores, axis=-1)
    ctx = jnp.einsum("bhqk,bhkd->bhqd", probs, v, precision=hp)
    ctx = ctx.transpose(0, 2, 1, 3).reshape(B, S, H)

    def layer_norm(x, g, b):
        mu = x.mean(-1, keepdims=True)
        var = ((x - mu) ** 2).mean(-1, keepdims=True)
        return (x - mu) / jnp.sqrt(var + eps) * g + b

    attn_out = layer_norm(linear(ctx, params["wo"], params["bo"]) + hidden_states,
                          params["ln1_g"], params["ln1_b"])
    inter = jax.nn.gelu(linear(attn_out, params["wi"], params["bi"]), approximate=False)
    out = layer_norm(linear(inter, params["wo2"], params["bo2"]) + attn_out,
                     params["ln2_g"], params["ln2_b"])
    return out


if __name__ == "__main__":
    # Config: hidden_size=32, intermediate_size=64, attention_heads=4, gelu, eps=1e-12
    batch, seq, hidden, inter_size, heads = 2, 8, 32, 64, 4
    eps = 1e-12

    key = jax.random.PRNGKey(0)
    keys = jax.random.split(key, 18)

    hidden_states = jax.random.normal(keys[0], (batch, seq, hidden), dtype=jnp.float32)

    def lin_params(kw, kb, din, dout):
        w = jax.random.normal(kw, (din, dout), dtype=jnp.float32) * 0.05
        b = jax.random.normal(kb, (dout,), dtype=jnp.float32) * 0.05
        return w, b

    wq, bq = lin_params(keys[1], keys[2], hidden, hidden)
    wk, bk = lin_params(keys[3], keys[4], hidden, hidden)
    wv, bv = lin_params(keys[5], keys[6], hidden, hidden)
    wo, bo = lin_params(keys[7], keys[8], hidden, hidden)
    wi, bi = lin_params(keys[9], keys[10], hidden, inter_size)
    wo2, bo2 = lin_params(keys[11], keys[12], inter_size, hidden)

    params = dict(
        wq=wq, bq=bq, wk=wk, bk=bk, wv=wv, bv=bv, wo=wo, bo=bo,
        wi=wi, bi=bi, wo2=wo2, bo2=bo2,
        ln1_g=1.0 + 0.1 * jax.random.normal(keys[13], (hidden,), jnp.float32),
        ln1_b=0.1 * jax.random.normal(keys[14], (hidden,), jnp.float32),
        ln2_g=1.0 + 0.1 * jax.random.normal(keys[15], (hidden,), jnp.float32),
        ln2_b=0.1 * jax.random.normal(keys[16], (hidden,), jnp.float32),
    )

    # Additive attention mask (B, S, S): batch 0 fully valid, batch 1 masks last 3 keys.
    lengths = jnp.array([seq, seq - 3])
    key_valid = (jnp.arange(seq)[None, :] < lengths[:, None]).astype(jnp.float32)  # (B, S)
    attention_mask = jnp.broadcast_to(((1.0 - key_valid) * -10000.0)[:, None, :],
                                      (batch, seq, seq))

    out = layer_forward(hidden_states, attention_mask, params, num_heads=heads, eps=eps)
    out = jax.block_until_ready(out)

    ref = reference_forward(hidden_states, attention_mask, params, num_heads=heads, eps=eps)
    assert out.shape == (batch, seq, hidden)
    max_err = float(jnp.max(jnp.abs(out - ref)))
    assert jnp.allclose(out, ref, atol=1e-4, rtol=1e-4), f"mismatch vs reference, max|diff|={max_err}"

    print("KERNEL_OK")
</pallas_src>

<mosaic_0001>
module attributes {stable_mosaic.version = 11 : i64} {
  func.func @_matmul_bias_act_kernel(%arg0: i32, %arg1: i32, %arg2: memref<16x32xf32, #tpu.memory_space<vmem>>, %arg3: memref<32x128xf32, #tpu.memory_space<vmem>>, %arg4: memref<1x128xf32, #tpu.memory_space<vmem>>, %arg5: memref<16x128xf32, #tpu.memory_space<vmem>>) attributes {dimension_semantics = [#tpu.dimension_semantics<parallel>, #tpu.dimension_semantics<parallel>], iteration_bounds = array<i64: 1, 1>, scalar_prefetch = 0 : i64, scratch_operands = 0 : i64, tpu.core_type = #tpu.core_type<tc>, window_params = [{transform_indices = @transform_0, window_bounds = array<i64: 16, 32>}, {pipeline_mode = #tpu.pipeline_mode<synchronous>, transform_indices = @transform_1, window_bounds = array<i64: 32, 128>}, {transform_indices = @transform_2, window_bounds = array<i64: 1, 128>}, {transform_indices = @transform_3, window_bounds = array<i64: 16, 128>}]} {
    %c0 = arith.constant 0 : index
    %c0_0 = arith.constant 0 : index
    %0 = vector.load %arg2[%c0, %c0_0] : memref<16x32xf32, #tpu.memory_space<vmem>>, vector<16x32xf32>
    %c0_1 = arith.constant 0 : index
    %c0_2 = arith.constant 0 : index
    %1 = vector.load %arg3[%c0_1, %c0_2] : memref<32x128xf32, #tpu.memory_space<vmem>>, vector<32x128xf32>
    %cst = arith.constant dense<0.000000e+00> : vector<16x128xf32>
    %2 = tpu.matmul %0, %1, %cst {dimension_numbers = #tpu.dot_dimension_numbers<[1], [0], [0], [1], [0, 0, 1, 1], [], []>} : vector<16x32xf32>, vector<32x128xf32>, vector<16x128xf32> -> vector<16x128xf32>
    %c0_3 = arith.constant 0 : index
    %c0_4 = arith.constant 0 : index
    %3 = vector.load %arg4[%c0_3, %c0_4] : memref<1x128xf32, #tpu.memory_space<vmem>>, vector<1x128xf32>
    %4 = vector.broadcast %3 : vector<1x128xf32> to vector<16x128xf32>
    %5 = arith.addf %2, %4 : vector<16x128xf32>
    %c0_5 = arith.constant 0 : index
    %c0_6 = arith.constant 0 : index
    %6 = vector.load %arg5[%c0_5, %c0_6] : memref<16x128xf32, #tpu.memory_space<vmem>>, vector<16x128xf32>
    tpu.vector_store %arg5[%c0_5, %c0_6], %5 {strides = array<i32>} : memref<16x128xf32, #tpu.memory_space<vmem>>, vector<16x128xf32>,
    return
  }
  func.func @transform_0(%arg0: i32, %arg1: i32) -> (i32, i32) {
    %c0_i32 = arith.constant 0 : i32
    %c0_i32_0 = arith.constant 0 : i32
    return %arg1, %c0_i32 : i32, i32
  }
  func.func @transform_1(%arg0: i32, %arg1: i32) -> (i32, i32) {
    %c0_i32 = arith.constant 0 : i32
    %c0_i32_0 = arith.constant 0 : i32
    return %c0_i32, %arg0 : i32, i32
  }
  func.func @transform_2(%arg0: i32, %arg1: i32) -> (i32, i32) {
    %c0_i32 = arith.constant 0 : i32
    %c0_i32_0 = arith.constant 0 : i32
    return %c0_i32, %arg0 : i32, i32
  }
  func.func @transform_3(%arg0: i32, %arg1: i32) -> (i32, i32) {
    %c0_i32 = arith.constant 0 : i32
    return %arg1, %arg0 : i32, i32
  }
}

</mosaic_0001>

<llo_original>
// kernel: tpu_custom_call.1
$region0: #{tpu_custom_call.1}
  #allocation0 [shape = 'u32[]', space=smem, size = 0x4, offset = 0x4, fixed_abs, tag = 'smem constant byte address 0x4 - core index']
  #allocation1 [shape = 'u32[72,128]{1,0:T(1,128)}', space=vmem, size = 0x9000, scoped, tag = 'internal scratch']
  %s0 = inlined_call_operand.hbm [shape: f32[16,32], index: 0, kind: input, shape index: {}]
  %s1 = inlined_call_operand.hbm [shape: f32[32,128], index: 1, kind: input, shape index: {}]
  %s2 = inlined_call_operand.vmem [shape: f32[1,128], index: 2, kind: input, shape index: {}]
  %s3 = inlined_call_operand.hbm [shape: f32[16,128], index: 3, kind: output, shape index: {}]
  %s4 = sld [smem:[#allocation0]]
  $region30: #{tpu_custom_call.1} parent=0
    _
  %s6 = ssub.s32 1, %s4
  %s7 = scalar_select 0, %s6, %s4
  $region1: #{tpu_custom_call.1} parent=0
    #allocation2 [shape = 'u8[8192]{0}', space=vmem, size = 0x2000, scoped, tag = 'input window, operand 0, single buffered']
    #allocation3 [shape = 's32[1]{0}', space=sflag, size = 0x4, scoped, tag = 'scoped memory for tpu_custom_call.1']
    #allocation4 [shape = 's32[1]{0}', space=sflag, size = 0x4, scoped, tag = 'scoped memory for tpu_custom_call.1']
    #allocation5 [shape = 'u8[16384]{0}', space=vmem, size = 0x4000, scoped, tag = 'input window, operand 1, single buffered']
    #allocation6 [shape = 's32[1]{0}', space=sflag, size = 0x4, scoped, tag = 'scoped memory for tpu_custom_call.1']
    #allocation7 [shape = 'u8[8192]{0}', space=vmem, size = 0x2000, scoped, tag = 'output window, operand 0, single buffered']
    %8 = vsyncpa [#allocation3], 0
    %9 = vsyncpa [#allocation6], 0
    %10 = vsyncpa [#allocation4], 0
    // Predicated region
    $region2: #{tpu_custom_call.1} parent=1 // pred_check
      _
    $region3: #{tpu_custom_call.1} parent=1 // pred_check_branch
      %12 = sbr.rel (0) target = $region5
    $region4: #{tpu_custom_call.1} parent=1 // pred_region
      %14 = vsyncadd [#allocation3], 0
      %s15 = sshll.u32 %s0, 4
      %s16 = int_to_ptr.hbm [resolvable:$true] %s15
      %s17 = sshll.u32 [#allocation2], 4
      %s18 = int_to_ptr.vmem [resolvable:$true] %s17
      %23 = dma.hbm_to_vmem [thread:$0]  %s16, 256, %s18, [#allocation3], 128, 128, 8
    $region5: #{tpu_custom_call.1} parent=1 // pred_fallthru
      _
    // Predicated region
    $region6: #{tpu_custom_call.1} parent=1 // pred_check
      _
    $region7: #{tpu_custom_call.1} parent=1 // pred_check_branch
      %25 = sbr.rel (0) target = $region9
    $region8: #{tpu_custom_call.1} parent=1 // pred_region
      %27 = vsyncadd [#allocation6], 0
      %s28 = sshll.u32 %s1, 4
      %s29 = int_to_ptr.hbm [resolvable:$true] %s28
      %s30 = sshll.u32 [#allocation5], 4
      %s31 = int_to_ptr.vmem [resolvable:$true] %s30
      %36 = dma.hbm_to_vmem [thread:$0]  %s29, 512, %s31, [#allocation6], 128, 128, 8
    $region9: #{tpu_custom_call.1} parent=1 // pred_fallthru
      _
    // Predicated region
    $region10: #{tpu_custom_call.1} parent=1 // pred_check
      _
    $region11: #{tpu_custom_call.1} parent=1 // pred_check_branch
      %38 = sbr.rel (0) target = $region13
    $region12: #{tpu_custom_call.1} parent=1 // pred_region
      _
    $region13: #{tpu_custom_call.1} parent=1 // pred_fallthru
      _
    // Predicated region
    $region14: #{tpu_custom_call.1} parent=1 // pred_check
      _
    $region15: #{tpu_custom_call.1} parent=1 // pred_check_branch
      %40 = sbr.rel (0) target = $region17
    $region16: #{tpu_custom_call.1} parent=1 // pred_region
      %42 = dma.done [#allocation3], 256
    $region17: #{tpu_custom_call.1} parent=1 // pred_fallthru
      _
    // Predicated region
    $region18: #{tpu_custom_call.1} parent=1 // pred_check
      _
    $region19: #{tpu_custom_call.1} parent=1 // pred_check_branch
      %44 = sbr.rel (0) target = $region21
    $region20: #{tpu_custom_call.1} parent=1 // pred_region
      %46 = dma.done [#allocation6], 512
    $region21: #{tpu_custom_call.1} parent=1 // pred_fallthru
      _
    %v47 = vld [vmem:[#allocation2] sm:$0xff]
    %v48 = vld [vmem:[#allocation2 + $0x8] sm:$0xff]
    %v49 = vld [vmem:[#allocation5] sm:$0xff]
    %v50 = vld [vmem:[#allocation5 + $0x8] sm:$0xff]
    %v51 = vld [vmem:[#allocation5 + $0x10] sm:$0xff]
    %v52 = vld [vmem:[#allocation5 + $0x18] sm:$0xff]
    %v53 = vld [vmem:[%s2] sm:$0x1]
    %v55 = vperm.slane %v53, 0
    %vm57 = vcmask 261120
    %v59 = vsel %vm57, %v47, 0
    %v62 = vsel %vm57, %v48, 0
    %64 = vmatpush.msra.mxu0 0.0
    %65 = vmatpush.msra.mxu0 0.0
    %66 = vmatpush.msra.mxu0 0.0
    %67 = vmatpush.msra.mxu0 0.0
    %68 = vmatpush.msra.mxu0 0.0
    %69 = vmatpush.msra.mxu0 0.0
    %70 = vmatpush.msra.mxu0 0.0
    %71 = vmatpush.msra.mxu0 0.0
    %72 = vmatpush.msra.mxu0 0.0
    %73 = vmatpush.msra.mxu0 0.0
    %74 = vmatpush.msra.mxu0 0.0
    %75 = vmatpush.msra.mxu0 0.0
    %76 = vmatpush.msra.mxu0 %v52
    %77 = vmatpush.msra.mxu0 %v51
    %78 = vmatpush.msra.mxu0 %v50
    %79 = vmatpush.msra.mxu0 %v49
    %80 = vmatmul.f32.gmra.mxu0 %v59
    %v81 = vpop.f32.mrf.mxu0
    %v82 = vadd.f32 %v55, %v81
    %83 = vmatmul.f32.gmra.mxu0 %v62
    %v84 = vpop.f32.mrf.mxu0
    %v85 = vadd.f32 %v55, %v84
    %86 = vdwg.mxu0
    %87 = vst [vmem:[#allocation7] sm:$0xff] %v82
    %88 = vst [vmem:[#allocation7 + $0x8] sm:$0xff] %v85
    // Predicated region
    $region22: #{tpu_custom_call.1} parent=1 // pred_check
      _
    $region23: #{tpu_custom_call.1} parent=1 // pred_check_branch
      %90 = sbr.rel (0) target = $region25
    $region24: #{tpu_custom_call.1} parent=1 // pred_region
      %92 = vsyncadd [#allocation4], 0
      %s93 = sshll.u32 [#allocation7], 4
      %s94 = int_to_ptr.vmem [resolvable:$true] %s93
      %s95 = sshll.u32 %s3, 4
      %s96 = int_to_ptr.hbm [resolvable:$true] %s95
      %101 = dma.vmem_to_hbm [thread:$0]  %s94, 256, %s96, [#allocation4], 128, 128, 8
    $region25: #{tpu_custom_call.1} parent=1 // pred_fallthru
      _
    // Predicated region
    $region26: #{tpu_custom_call.1} parent=1 // pred_check
      _
    $region27: #{tpu_custom_call.1} parent=1 // pred_check_branch
      %103 = sbr.rel (0) target = $region29
    $region28: #{tpu_custom_call.1} parent=1 // pred_region
      %105 = dma.done [#allocation4], 256
    $region29: #{tpu_custom_call.1} parent=1 // pred_fallthru
      _
    %106 = vsyncpa [#allocation3], 1
    %107 = vsyncpa [#allocation6], 1
    %108 = vsyncpa [#allocation4], 1

</llo_original>
